<compile_context>
chip_gen: v5e
topology: v5e:2x2
jax: 0.10.0
libtpu: 0.0.40
codegen_flags: <defaults>
</compile_context>

<pallas_src>
import math

import jax
import jax.numpy as jnp
from jax.experimental import pallas as pl
from jax.experimental.pallas import tpu as pltpu


# ---------------------------------------------------------------------------
# Helpers
# ---------------------------------------------------------------------------
def _round_up(n, m):
    return (n + m - 1) // m * m


def _pick_tile(dim, max_tile, align=128):
    """Padded dim (multiple of `align`) and the largest tile <= max_tile that
    divides it (so no extra padding beyond `align` is needed)."""
    padded = _round_up(dim, align)
    tile = min(_round_up(max_tile, align), padded)
    while padded % tile:
        tile -= align
    return tile, padded


_VMEM_LIMIT_BYTES = 32 * 1024 * 1024     # explicit; safe on v5e/v6e/v7x
_RESIDENT_K_BUDGET = 20 * 1024 * 1024    # headroom under the limit above


# ---------------------------------------------------------------------------
# Kernels
# ---------------------------------------------------------------------------
def _dense_tanh_kernel(x_ref, w_ref, b_ref, o_ref):
    """Resident-K path: one (tm, tn) output tile, full K in VMEM.

    x_ref: [tm, Kp] f32  (cast to bf16 here on the VPU; MXU/DMA have slack)
    w_ref: [Kp, tn] bf16 (pre-cast once at init)
    b_ref: [1,  tn] f32
    """
    acc = jnp.dot(x_ref[...].astype(jnp.bfloat16), w_ref[...],
                  preferred_element_type=jnp.float32)
    o_ref[...] = jnp.tanh(acc + b_ref[...]).astype(o_ref.dtype)


def _dense_tanh_kernel_ktiled(x_ref, w_ref, b_ref, o_ref, acc_ref):
    """Fallback when K does not fit VMEM: accumulate over the K grid axis."""
    k = pl.program_id(2)

    @pl.when(k == 0)
    def _():
        # Seed the accumulator with the bias so the epilogue is tanh + cast.
        acc_ref[...] = jnp.broadcast_to(b_ref[...], acc_ref.shape)

    acc_ref[...] += jnp.dot(x_ref[...].astype(jnp.bfloat16), w_ref[...],
                            preferred_element_type=jnp.float32)

    @pl.when(k == pl.num_programs(2) - 1)
    def _():
        o_ref[...] = jnp.tanh(acc_ref[...]).astype(o_ref.dtype)


# ---------------------------------------------------------------------------
# Wrapper / factory (parameter prep hoisted out of the hot path)
# ---------------------------------------------------------------------------
def make_base_network_forward(w, b, *, block_m=256, block_n=512, block_k=512,
                              residency_budget_bytes=_RESIDENT_K_BUDGET):
    """Build forward(x) = tanh(x @ W + b) with W/b padded + cast exactly once.

    w: [din, dout] f32, b: [dout] f32.  forward(x): [batch, din] -> [batch, dout].
    """
    din, dout = w.shape
    assert b.shape == (dout,), "bias must be [dout]"

    tn, np_ = _pick_tile(dout, block_n)

    # Decide K residency at init time with the worst-case tm (= block_m) so the
    # weight padding for either path is done once, not per call.
    kp_res = _round_up(din, 128)
    resident_bytes = 2 * (block_m * kp_res * 4      # x block (f32), double-buffered
                          + kp_res * tn * 2         # w block (bf16)
                          + tn * 4                  # bias block
                          + block_m * tn * 4)       # output block
    use_resident_k = resident_bytes <= residency_budget_bytes

    if use_resident_k:
        tk, kp = kp_res, kp_res
    else:
        tk, kp = _pick_tile(din, block_k)

    wp = jnp.pad(w.astype(jnp.bfloat16), ((0, kp - din), (0, np_ - dout)))
    bp = jnp.pad(b.astype(jnp.float32), (0, np_ - dout)).reshape(1, np_)

    def forward(x):
        batch, din_x = x.shape
        assert din_x == din, "x / W inner dims must match"
        out_dtype = x.dtype

        # Shrink tm for tiny batches: don't pad batch=8 up to 128 MXU rows.
        tm = min(block_m, _round_up(batch, 16))
        mp = _round_up(batch, tm)

        xp = x if (mp == batch and kp == din) else jnp.pad(
            x, ((0, mp - batch), (0, kp - din)))

        if use_resident_k:
            # x block index ignores j, so each x tile is DMA'd once and reused
            # across the whole N axis -> f32 x input + in-kernel bf16 cast is a
            # strict win over a wrapper-side cast pass.
            out_padded = pl.pallas_call(
                _dense_tanh_kernel,
                out_shape=jax.ShapeDtypeStruct((mp, np_), out_dtype),
                grid_spec=pltpu.PrefetchScalarGridSpec(
                    num_scalar_prefetch=0,
                    grid=(mp // tm, np_ // tn),
                    in_specs=[
                        pl.BlockSpec((tm, kp), lambda i, j: (i, 0)),
                        pl.BlockSpec((kp, tn), lambda i, j: (0, j)),
                        pl.BlockSpec((1, tn), lambda i, j: (0, j)),
                    ],
                    out_specs=pl.BlockSpec((tm, tn), lambda i, j: (i, j)),
                ),
                compiler_params=pltpu.CompilerParams(
                    dimension_semantics=("parallel", "parallel"),
                    vmem_limit_bytes=_VMEM_LIMIT_BYTES,
                ),
            )(xp, wp, bp)
        else:
            out_padded = pl.pallas_call(
                _dense_tanh_kernel_ktiled,
                out_shape=jax.ShapeDtypeStruct((mp, np_), out_dtype),
                grid_spec=pltpu.PrefetchScalarGridSpec(
                    num_scalar_prefetch=0,
                    grid=(mp // tm, np_ // tn, kp // tk),
                    in_specs=[
                        pl.BlockSpec((tm, tk), lambda i, j, k: (i, k)),
                        pl.BlockSpec((tk, tn), lambda i, j, k: (k, j)),
                        pl.BlockSpec((1, tn), lambda i, j, k: (0, j)),
                    ],
                    out_specs=pl.BlockSpec((tm, tn), lambda i, j, k: (i, j)),
                    scratch_shapes=[pltpu.VMEM((tm, tn), jnp.float32)],
                ),
                compiler_params=pltpu.CompilerParams(
                    dimension_semantics=("parallel", "parallel", "arbitrary"),
                    vmem_limit_bytes=_VMEM_LIMIT_BYTES,
                ),
            )(xp, wp, bp)

        return out_padded[:batch, :dout]

    return forward


# ---------------------------------------------------------------------------
# Init + reference
# ---------------------------------------------------------------------------
def _xavier_uniform(key, shape, dtype=jnp.float32):
    """Deterministic Xavier-uniform init (the module's `initialiser_function`)."""
    fan_in, fan_out = shape[0], shape[1]
    limit = math.sqrt(6.0 / (fan_in + fan_out))
    return jax.random.uniform(key, shape, dtype=dtype, minval=-limit, maxval=limit)


def _reference(x, w, b):
    """Pure-JAX reference matching the kernel's bf16-operand / f32-accumulate path."""
    xc = x.astype(jnp.bfloat16).astype(jnp.float32)
    wc = w.astype(jnp.bfloat16).astype(jnp.float32)
    acc = jnp.dot(xc, wc, precision=jax.lax.Precision.HIGHEST)
    return jnp.tanh(acc + b.astype(jnp.float32)[None, :]).astype(x.dtype)


# ---------------------------------------------------------------------------
# Main
# ---------------------------------------------------------------------------
if __name__ == "__main__":
    key = jax.random.PRNGKey(0)
    keys = jax.random.split(key, 9)

    # --- small shape implied by the module (single tile, tm shrunk to 16) ---
    batch, din, dout = 8, 32, 128
    x = jax.random.normal(keys[0], (batch, din), dtype=jnp.float32)
    w = _xavier_uniform(keys[1], (din, dout))
    b = jax.random.uniform(keys[2], (dout,), dtype=jnp.float32,
                           minval=-0.1, maxval=0.1)
    fwd = make_base_network_forward(w, b)
    out = jax.block_until_ready(fwd(x))
    ref = _reference(x, w, b)
    assert out.shape == (batch, dout)
    assert jnp.allclose(out, ref, atol=2e-4, rtol=2e-4), "small-shape mismatch"

    # --- multi-tile resident-K path: grid = (2, 2), K fully resident --------
    batch2, din2, dout2 = 384, 384, 768
    x2 = jax.random.normal(keys[3], (batch2, din2), dtype=jnp.float32)
    w2 = _xavier_uniform(keys[4], (din2, dout2))
    b2 = jax.random.uniform(keys[5], (dout2,), dtype=jnp.float32,
                            minval=-0.1, maxval=0.1)
    fwd2 = make_base_network_forward(w2, b2)
    out2 = jax.block_until_ready(fwd2(x2))
    ref2 = _reference(x2, w2, b2)
    assert out2.shape == (batch2, dout2)
    assert jnp.allclose(out2, ref2, atol=2e-4, rtol=2e-4), "resident-K mismatch"

    # --- forced K-tiled fallback path (accumulator over the K grid axis) ----
    batch3, din3, dout3 = 128, 512, 256
    x3 = jax.random.normal(keys[6], (batch3, din3), dtype=jnp.float32)
    w3 = _xavier_uniform(keys[7], (din3, dout3))
    b3 = jax.random.uniform(keys[8], (dout3,), dtype=jnp.float32,
                            minval=-0.1, maxval=0.1)
    fwd3 = make_base_network_forward(w3, b3, block_k=256,
                                     residency_budget_bytes=1)  # force fallback
    out3 = jax.block_until_ready(fwd3(x3))
    ref3 = _reference(x3, w3, b3)
    assert out3.shape == (batch3, dout3)
    assert jnp.allclose(out3, ref3, atol=2e-4, rtol=2e-4), "K-tiled mismatch"

    print("KERNEL_OK")
</pallas_src>

<mosaic_0001>
module attributes {stable_mosaic.version = 11 : i64} {
  func.func @_dense_tanh_kernel(%arg0: i32, %arg1: i32, %arg2: memref<16x128xf32, #tpu.memory_space<vmem>>, %arg3: memref<128x128xbf16, #tpu.memory_space<vmem>>, %arg4: memref<1x128xf32, #tpu.memory_space<vmem>>, %arg5: memref<16x128xf32, #tpu.memory_space<vmem>>) attributes {dimension_semantics = [#tpu.dimension_semantics<parallel>, #tpu.dimension_semantics<parallel>], iteration_bounds = array<i64: 1, 1>, scalar_prefetch = 0 : i64, scratch_operands = 0 : i64, tpu.core_type = #tpu.core_type<tc>, window_params = [{transform_indices = @transform_0, window_bounds = array<i64: 16, 128>}, {transform_indices = @transform_1, window_bounds = array<i64: 128, 128>}, {transform_indices = @transform_2, window_bounds = array<i64: 1, 128>}, {transform_indices = @transform_3, window_bounds = array<i64: 16, 128>}]} {
    %c0 = arith.constant 0 : index
    %c0_0 = arith.constant 0 : index
    %0 = vector.load %arg2[%c0, %c0_0] : memref<16x128xf32, #tpu.memory_space<vmem>>, vector<16x128xf32>
    %1 = arith.truncf %0 : vector<16x128xf32> to vector<16x128xbf16>
    %c0_1 = arith.constant 0 : index
    %c0_2 = arith.constant 0 : index
    %2 = vector.load %arg3[%c0_1, %c0_2] : memref<128x128xbf16, #tpu.memory_space<vmem>>, vector<128x128xbf16>
    %cst = arith.constant dense<0.000000e+00> : vector<16x128xf32>
    %3 = tpu.matmul %1, %2, %cst {dimension_numbers = #tpu.dot_dimension_numbers<[1], [0], [0], [1], [0, 0, 1, 1], [], []>} : vector<16x128xbf16>, vector<128x128xbf16>, vector<16x128xf32> -> vector<16x128xf32>
    %c0_3 = arith.constant 0 : index
    %c0_4 = arith.constant 0 : index
    %4 = vector.load %arg4[%c0_3, %c0_4] : memref<1x128xf32, #tpu.memory_space<vmem>>, vector<1x128xf32>
    %5 = vector.broadcast %4 : vector<1x128xf32> to vector<16x128xf32>
    %6 = arith.addf %3, %5 : vector<16x128xf32>
    %7 = math.tanh %6 : vector<16x128xf32>
    %c0_5 = arith.constant 0 : index
    %c0_6 = arith.constant 0 : index
    %8 = vector.load %arg5[%c0_5, %c0_6] : memref<16x128xf32, #tpu.memory_space<vmem>>, vector<16x128xf32>
    tpu.vector_store %arg5[%c0_5, %c0_6], %7 {strides = array<i32>} : memref<16x128xf32, #tpu.memory_space<vmem>>, vector<16x128xf32>,
    return
  }
  func.func @transform_0(%arg0: i32, %arg1: i32) -> (i32, i32) {
    %c0_i32 = arith.constant 0 : i32
    %c0_i32_0 = arith.constant 0 : i32
    return %arg0, %c0_i32 : i32, i32
  }
  func.func @transform_1(%arg0: i32, %arg1: i32) -> (i32, i32) {
    %c0_i32 = arith.constant 0 : i32
    %c0_i32_0 = arith.constant 0 : i32
    return %c0_i32, %arg1 : i32, i32
  }
  func.func @transform_2(%arg0: i32, %arg1: i32) -> (i32, i32) {
    %c0_i32 = arith.constant 0 : i32
    %c0_i32_0 = arith.constant 0 : i32
    return %c0_i32, %arg1 : i32, i32
  }
  func.func @transform_3(%arg0: i32, %arg1: i32) -> (i32, i32) {
    %c0_i32 = arith.constant 0 : i32
    return %arg0, %arg1 : i32, i32
  }
}

</mosaic_0001>

<llo_original>
// kernel: tpu_custom_call.1
$region0: #{tpu_custom_call.1}
  #allocation0 [shape = 'u32[]', space=smem, size = 0x4, offset = 0x4, fixed_abs, tag = 'smem constant byte address 0x4 - core index']
  #allocation1 [shape = 'u32[72,128]{1,0:T(1,128)}', space=vmem, size = 0x9000, scoped, tag = 'internal scratch']
  %s0 = inlined_call_operand.hbm [shape: f32[16,128], index: 0, kind: input, shape index: {}]
  %s1 = inlined_call_operand.hbm [shape: bf16[128,128], index: 1, kind: input, shape index: {}]
  %s2 = inlined_call_operand.vmem [shape: f32[1,128], index: 2, kind: input, shape index: {}]
  %s3 = inlined_call_operand.hbm [shape: f32[16,128], index: 3, kind: output, shape index: {}]
  %s4 = sld [smem:[#allocation0]]
  $region30: #{tpu_custom_call.1} parent=0
    _
  %s6 = ssub.s32 1, %s4
  %s7 = scalar_select 0, %s6, %s4
  $region1: #{tpu_custom_call.1} parent=0
    #allocation2 [shape = 'u8[8192]{0}', space=vmem, size = 0x2000, scoped, tag = 'input window, operand 0, single buffered']
    #allocation3 [shape = 's32[1]{0}', space=sflag, size = 0x4, scoped, tag = 'scoped memory for tpu_custom_call.1']
    #allocation4 [shape = 's32[1]{0}', space=sflag, size = 0x4, scoped, tag = 'scoped memory for tpu_custom_call.1']
    #allocation5 [shape = 'u8[32768]{0}', space=vmem, size = 0x8000, scoped, tag = 'input window, operand 1, single buffered']
    #allocation6 [shape = 's32[1]{0}', space=sflag, size = 0x4, scoped, tag = 'scoped memory for tpu_custom_call.1']
    #allocation7 [shape = 'u8[8192]{0}', space=vmem, size = 0x2000, scoped, tag = 'output window, operand 0, single buffered']
    %8 = vsyncpa [#allocation3], 0
    %9 = vsyncpa [#allocation6], 0
    %10 = vsyncpa [#allocation4], 0
    // Predicated region
    $region2: #{tpu_custom_call.1} parent=1 // pred_check
      _
    $region3: #{tpu_custom_call.1} parent=1 // pred_check_branch
      %12 = sbr.rel (0) target = $region5
    $region4: #{tpu_custom_call.1} parent=1 // pred_region
      %14 = vsyncadd [#allocation3], 0
      %s15 = sshll.u32 %s0, 4
      %s16 = int_to_ptr.hbm [resolvable:$true] %s15
      %s17 = sshll.u32 [#allocation2], 4
      %s18 = int_to_ptr.vmem [resolvable:$true] %s17
      %23 = dma.hbm_to_vmem [thread:$0]  %s16, 256, %s18, [#allocation3], 128, 128, 8
    $region5: #{tpu_custom_call.1} parent=1 // pred_fallthru
      _
    // Predicated region
    $region6: #{tpu_custom_call.1} parent=1 // pred_check
      _
    $region7: #{tpu_custom_call.1} parent=1 // pred_check_branch
      %25 = sbr.rel (0) target = $region9
    $region8: #{tpu_custom_call.1} parent=1 // pred_region
      %27 = vsyncadd [#allocation6], 0
      %s28 = sshll.u32 %s1, 4
      %s29 = int_to_ptr.hbm [resolvable:$true] %s28
      %s30 = sshll.u32 [#allocation5], 4
      %s31 = int_to_ptr.vmem [resolvable:$true] %s30
      %36 = dma.hbm_to_vmem [thread:$0]  %s29, 1024, %s31, [#allocation6], 64, 64, 4
    $region9: #{tpu_custom_call.1} parent=1 // pred_fallthru
      _
    // Predicated region
    $region10: #{tpu_custom_call.1} parent=1 // pred_check
      _
    $region11: #{tpu_custom_call.1} parent=1 // pred_check_branch
      %38 = sbr.rel (0) target = $region13
    $region12: #{tpu_custom_call.1} parent=1 // pred_region
      _
    $region13: #{tpu_custom_call.1} parent=1 // pred_fallthru
      _
    // Predicated region
    $region14: #{tpu_custom_call.1} parent=1 // pred_check
      _
    $region15: #{tpu_custom_call.1} parent=1 // pred_check_branch
      %40 = sbr.rel (0) target = $region17
    $region16: #{tpu_custom_call.1} parent=1 // pred_region
      %42 = dma.done [#allocation3], 256
    $region17: #{tpu_custom_call.1} parent=1 // pred_fallthru
      _
    // Predicated region
    $region18: #{tpu_custom_call.1} parent=1 // pred_check
      _
    $region19: #{tpu_custom_call.1} parent=1 // pred_check_branch
      %44 = sbr.rel (0) target = $region21
    $region20: #{tpu_custom_call.1} parent=1 // pred_region
      %46 = dma.done [#allocation6], 1024
    $region21: #{tpu_custom_call.1} parent=1 // pred_fallthru
      _
    %v47 = vld [vmem:[#allocation2] sm:$0xff]
    %v48 = vld [vmem:[#allocation2 + $0x8] sm:$0xff]
    %v49 = vpack.c.bf16 %v48, %v47
    %v50 = vld [vmem:[#allocation5] sm:$0xf]
    %v51 = vld [vmem:[#allocation5 + $0x4] sm:$0xf]
    %v52 = vld [vmem:[#allocation5 + $0x8] sm:$0xf]
    %v53 = vld [vmem:[#allocation5 + $0xc] sm:$0xf]
    %v54 = vld [vmem:[#allocation5 + $0x10] sm:$0xf]
    %v55 = vld [vmem:[#allocation5 + $0x14] sm:$0xf]
    %v56 = vld [vmem:[#allocation5 + $0x18] sm:$0xf]
    %v57 = vld [vmem:[#allocation5 + $0x1c] sm:$0xf]
    %v58 = vld [vmem:[#allocation5 + $0x20] sm:$0xf]
    %v59 = vld [vmem:[#allocation5 + $0x24] sm:$0xf]
    %v60 = vld [vmem:[#allocation5 + $0x28] sm:$0xf]
    %v61 = vld [vmem:[#allocation5 + $0x2c] sm:$0xf]
    %v62 = vld [vmem:[#allocation5 + $0x30] sm:$0xf]
    %v63 = vld [vmem:[#allocation5 + $0x34] sm:$0xf]
    %v64 = vld [vmem:[#allocation5 + $0x38] sm:$0xf]
    %v65 = vld [vmem:[#allocation5 + $0x3c] sm:$0xf]
    %v66 = vld [vmem:[%s2] sm:$0x1]
    %v68 = vperm.slane %v66, 0
    %v86 = vunpack.c.l.b16 %v50
    %v87 = vunpack.c.l.b16 %v51
    %v88 = vunpack.c.l.b16 %v52
    %v89 = vunpack.c.l.b16 %v53
    %v90 = vunpack.c.l.b16 %v54
    %v91 = vunpack.c.l.b16 %v55
    %v92 = vunpack.c.l.b16 %v56
    %v93 = vunpack.c.l.b16 %v57
    %v94 = vunpack.c.l.b16 %v58
    %v95 = vunpack.c.l.b16 %v59
    %v96 = vunpack.c.l.b16 %v60
    %v97 = vunpack.c.l.b16 %v61
    %v98 = vunpack.c.l.b16 %v62
    %v99 = vunpack.c.l.b16 %v63
    %v100 = vunpack.c.l.b16 %v64
    %v101 = vunpack.c.l.b16 %v65
    %v102 = vpack.c.b16 %v87, %v86
    %v103 = vpack.c.b16 %v89, %v88
    %v104 = vpack.c.b16 %v91, %v90
    %v105 = vpack.c.b16 %v93, %v92
    %v106 = vpack.c.b16 %v95, %v94
    %v107 = vpack.c.b16 %v97, %v96
    %v108 = vpack.c.b16 %v99, %v98
    %v109 = vpack.c.b16 %v101, %v100
    %118 = vmatpush.bf16.msra.mxu0 %v109
    %119 = vmatpush.bf16.msra.mxu0 %v108
    %120 = vmatpush.bf16.msra.mxu0 %v107
    %121 = vmatpush.bf16.msra.mxu0 %v106
    %122 = vmatpush.bf16.msra.mxu0 %v105
    %123 = vmatpush.bf16.msra.mxu0 %v104
    %124 = vmatpush.bf16.msra.mxu0 %v103
    %125 = vmatpush.bf16.msra.mxu0 %v102
    %126 = vmatmul.bf16.gmra.mxu0 %v49
    %v127 = vpop.f32.mrf.mxu0
    %v128 = vadd.f32 %v68, %v127
    %v129 = vpop.f32.mrf.mxu0
    %v130 = vadd.f32 %v68, %v129
    %131 = vdwg.mxu0
    %v132 = vtanh.pop %v128
    %v133 = vtanh.pop %v130
    %134 = vst [vmem:[#allocation7] sm:$0xff] %v132
    %135 = vst [vmem:[#allocation7 + $0x8] sm:$0xff] %v133
    // Predicated region
    $region22: #{tpu_custom_call.1} parent=1 // pred_check
      _
    $region23: #{tpu_custom_call.1} parent=1 // pred_check_branch
      %137 = sbr.rel (0) target = $region25
    $region24: #{tpu_custom_call.1} parent=1 // pred_region
      %139 = vsyncadd [#allocation4], 0
      %s140 = sshll.u32 [#allocation7], 4
      %s141 = int_to_ptr.vmem [resolvable:$true] %s140
      %s142 = sshll.u32 %s3, 4
      %s143 = int_to_ptr.hbm [resolvable:$true] %s142
      %148 = dma.vmem_to_hbm [thread:$0]  %s141, 256, %s143, [#allocation4], 128, 128, 8
    $region25: #{tpu_custom_call.1} parent=1 // pred_fallthru
      _
    // Predicated region
    $region26: #{tpu_custom_call.1} parent=1 // pred_check
      _
    $region27: #{tpu_custom_call.1} parent=1 // pred_check_branch
      %150 = sbr.rel (0) target = $region29
    $region28: #{tpu_custom_call.1} parent=1 // pred_region
      %152 = dma.done [#allocation4], 256
    $region29: #{tpu_custom_call.1} parent=1 // pred_fallthru
      _
    %153 = vsyncpa [#allocation3], 1
    %154 = vsyncpa [#allocation6], 1
    %155 = vsyncpa [#allocation4], 1

</llo_original>
